<compile_context>
chip_gen: v5e
topology: v5e:2x2
jax: 0.10.0
libtpu: 0.0.40
codegen_flags: <defaults>
</compile_context>

<pallas_src>
import math
import numpy as np
import jax
import jax.numpy as jnp
from jax import lax
from jax.experimental import pallas as pl
from jax.experimental.pallas import tpu as pltpu

# ---- module hyperparameters (small, consistent with MappingNetwork defaults) ----
Z_DIM = 32
C_DIM = 8
W_DIM = 32
NUM_WS = 4
NUM_LAYERS = 8
LR_MULT = 0.01                 # lr_multiplier for fc layers
EMBED_FEATURES = W_DIM         # embed_features defaults to w_dim
LAYER_FEATURES = W_DIM         # layer_features defaults to w_dim
EPS = 1e-8
LRELU_ALPHA = 0.2
LRELU_GAIN = math.sqrt(2.0)    # bias_act 'lrelu' default gain

BATCH = 8

# TODO(synk): training-only w_avg EMA update and truncation (truncation_psi != 1)
#             paths are not implemented (eval path with psi=1 only).


def _normalize_2nd_moment(x):
    # x * (mean(x^2, dim=1, keepdim) + eps).rsqrt()
    return x * lax.rsqrt(jnp.mean(x * x, axis=1, keepdims=True) + EPS)


def _dot_wt(x, w):
    # x: [B, in], w: [out, in]  ->  x @ w.T : [B, out]  (MXU, f32 accumulate)
    return lax.dot_general(x, w, (((1,), (1,)), ((), ())),
                           preferred_element_type=jnp.float32)


def mapping_kernel(z_ref, c_ref, ew_ref, w0_ref, wstk_ref, bstk_ref, out_ref):
    """All static gains are pre-folded into ew / w0 / wstk / bstk (see prepare_params).

    bstk rows: [0] = embed bias, [1..NUM_LAYERS] = fc0..fc{L-1} biases (already * lr_mult).
    wstk[i-1] = fc_i weight * (lr_mult/sqrt(in)) * lrelu_gain   (gain of PREVIOUS layer folded in).
    """
    b = bstk_ref[...]                                       # [NUM_LAYERS+1, W_DIM]

    # ---- input stage: normalize z, embed(c)+normalize ----
    x = _normalize_2nd_moment(z_ref[...].astype(jnp.float32))
    y = _dot_wt(c_ref[...].astype(jnp.float32), ew_ref[...]) + b[0:1, :]
    y = _normalize_2nd_moment(y)

    # ---- fc0: concat([x, y], dim=1) @ W0.T as a single [B,64]x[64,32] dot ----
    h = jnp.concatenate([x, y], axis=1)                     # [B, Z_DIM + EMBED_FEATURES]
    t = _dot_wt(h, w0_ref[...]) + b[1:2, :]
    h = jnp.maximum(t, LRELU_ALPHA * t)                     # gain folded into next layer's W

    # ---- fc1 .. fc{num_layers-1} ----
    for i in range(1, NUM_LAYERS):
        t = _dot_wt(h, wstk_ref[i - 1]) + b[i + 1:i + 2, :]
        h = jnp.maximum(t, LRELU_ALPHA * t)

    h = h * LRELU_GAIN                                      # last layer's lrelu gain

    # ---- broadcast over num_ws: one lane-dense (B, NUM_WS*W_DIM) store ----
    out_ref[...] = jnp.concatenate([h] * NUM_WS, axis=1)


def mapping_forward(z, c, prep):
    B = z.shape[0]
    inputs = (z, c, prep["ew"], prep["w0"], prep["wstk"], prep["bstk"])

    flops = 2 * B * (C_DIM * EMBED_FEATURES
                     + (Z_DIM + EMBED_FEATURES) * LAYER_FEATURES
                     + (NUM_LAYERS - 1) * LAYER_FEATURES * W_DIM)
    bytes_in = sum(int(np.prod(a.shape)) * 4 for a in inputs)
    bytes_out = B * NUM_WS * W_DIM * 4

    vmem = pl.BlockSpec(memory_space=pltpu.MemorySpace.VMEM)
    out_flat = pl.pallas_call(
        mapping_kernel,
        out_shape=jax.ShapeDtypeStruct((B, NUM_WS * W_DIM), jnp.float32),
        in_specs=[vmem] * len(inputs),
        out_specs=vmem,
        cost_estimate=pl.CostEstimate(flops=flops, transcendentals=2 * B,
                                      bytes_accessed=bytes_in + bytes_out),
    )(*inputs)
    # metadata-only reshape: (B, NUM_WS*W_DIM) row-major == (B, NUM_WS, W_DIM)
    return out_flat.reshape(B, NUM_WS, W_DIM)


def init_params(key):
    """Raw parameters matching FullyConnectedLayer.__init__ (weight = randn/lr_mult, bias = 0)."""
    params = {}
    keys = jax.random.split(key, NUM_LAYERS + 1)

    # embed = FullyConnectedLayer(c_dim, embed_features), lr_multiplier=1, bias_init=0
    params["ew"] = jax.random.normal(keys[0], (EMBED_FEATURES, C_DIM), jnp.float32)
    params["eb"] = jnp.zeros((EMBED_FEATURES,), jnp.float32)

    features = [Z_DIM + EMBED_FEATURES] + [LAYER_FEATURES] * (NUM_LAYERS - 1) + [W_DIM]
    for i in range(NUM_LAYERS):
        in_f, out_f = features[i], features[i + 1]
        params[f"w{i}"] = jax.random.normal(keys[i + 1], (out_f, in_f), jnp.float32) / LR_MULT
        params[f"b{i}"] = jnp.zeros((out_f,), jnp.float32)
    return params


def prepare_params(params):
    """One-time gain folding + stacking (NOT per forward call)."""
    fc0_in = Z_DIM + EMBED_FEATURES
    ew_s = params["ew"] * (1.0 / math.sqrt(C_DIM))                       # embed lr_mult = 1
    w0_s = params["w0"] * (LR_MULT / math.sqrt(fc0_in))
    # fold lr_mult/sqrt(in) AND the previous layer's lrelu gain into fc1..fc7 weights
    wstk = jnp.stack(
        [params[f"w{i}"] * (LR_MULT / math.sqrt(LAYER_FEATURES) * LRELU_GAIN)
         for i in range(1, NUM_LAYERS)], axis=0)                         # [L-1, W, W]
    # biases: row 0 = embed bias (bias_gain = 1), rows 1.. = fc biases * lr_mult
    bstk = jnp.stack([params["eb"]]
                     + [params[f"b{i}"] * LR_MULT for i in range(NUM_LAYERS)],
                     axis=0)                                             # [L+1, W]
    return {"ew": ew_s, "w0": w0_s, "wstk": wstk, "bstk": bstk}


def reference_forward(z, c, params):
    """Pure-JAX reference matching the PyTorch semantics exactly (raw params, per-op gains)."""
    def norm(x):
        return x * lax.rsqrt(jnp.mean(x * x, axis=1, keepdims=True) + EPS)

    x = norm(z.astype(jnp.float32))
    ew = params["ew"] * (1.0 / math.sqrt(C_DIM))
    y = norm(c.astype(jnp.float32) @ ew.T + params["eb"][None, :])
    h = jnp.concatenate([x, y], axis=1)

    for i in range(NUM_LAYERS):
        w = params[f"w{i}"]
        b = params[f"b{i}"]
        wg = LR_MULT / math.sqrt(w.shape[1])
        t = h @ (w * wg).T + (b * LR_MULT)[None, :]
        h = jnp.where(t >= 0.0, t, LRELU_ALPHA * t) * LRELU_GAIN

    return jnp.tile(h[:, None, :], (1, NUM_WS, 1))


if __name__ == "__main__":
    key = jax.random.PRNGKey(0)
    kz, kc, kp = jax.random.split(key, 3)
    z = jax.random.normal(kz, (BATCH, Z_DIM), jnp.float32)
    c = jax.random.normal(kc, (BATCH, C_DIM), jnp.float32)  # conditioning vector
    params = init_params(kp)
    prep = prepare_params(params)

    out = mapping_forward(z, c, prep)
    out = jax.block_until_ready(out)

    ref = reference_forward(z, c, params)
    assert out.shape == (BATCH, NUM_WS, W_DIM), out.shape
    np.testing.assert_allclose(np.asarray(out), np.asarray(ref),
                               rtol=1e-4, atol=1e-5)
    print("KERNEL_OK")
</pallas_src>

<mosaic_0001>
module attributes {stable_mosaic.version = 11 : i64} {
  func.func @mapping_kernel(%arg0: memref<8x32xf32, #tpu.memory_space<vmem>>, %arg1: memref<8x8xf32, #tpu.memory_space<vmem>>, %arg2: memref<32x8xf32, #tpu.memory_space<vmem>>, %arg3: memref<32x64xf32, #tpu.memory_space<vmem>>, %arg4: memref<7x32x32xf32, #tpu.memory_space<vmem>>, %arg5: memref<9x32xf32, #tpu.memory_space<vmem>>, %arg6: memref<8x128xf32, #tpu.memory_space<vmem>>) attributes {dimension_semantics = [], scalar_prefetch = 0 : i64, scratch_operands = 0 : i64, tpu.core_type = #tpu.core_type<tc>} {
    %c0 = arith.constant 0 : index
    %c0_0 = arith.constant 0 : index
    %0 = vector.load %arg5[%c0, %c0_0] : memref<9x32xf32, #tpu.memory_space<vmem>>, vector<9x32xf32>
    %c0_1 = arith.constant 0 : index
    %c0_2 = arith.constant 0 : index
    %1 = vector.load %arg0[%c0_1, %c0_2] : memref<8x32xf32, #tpu.memory_space<vmem>>, vector<8x32xf32>
    %2 = arith.mulf %1, %1 : vector<8x32xf32>
    %cst = arith.constant dense<0.000000e+00> : vector<8xf32>
    %3 = vector.multi_reduction <add>, %2, %cst [1] : vector<8x32xf32> to vector<8xf32>
    %4 = vector.shape_cast %3 : vector<8xf32> to vector<8x1xf32>
    %cst_3 = arith.constant 3.200000e+01 : f32
    %5 = vector.broadcast %cst_3 : f32 to vector<8x1xf32>
    %6 = arith.divf %4, %5 : vector<8x1xf32>
    %cst_4 = arith.constant 9.99999993E-9 : f32
    %7 = vector.broadcast %cst_4 : f32 to vector<8x1xf32>
    %8 = arith.addf %6, %7 : vector<8x1xf32>
    %9 = math.rsqrt %8 : vector<8x1xf32>
    %10 = vector.broadcast %9 : vector<8x1xf32> to vector<8x32xf32>
    %11 = arith.mulf %1, %10 : vector<8x32xf32>
    %c0_5 = arith.constant 0 : index
    %c0_6 = arith.constant 0 : index
    %12 = vector.load %arg1[%c0_5, %c0_6] : memref<8x8xf32, #tpu.memory_space<vmem>>, vector<8x8xf32>
    %c0_7 = arith.constant 0 : index
    %c0_8 = arith.constant 0 : index
    %13 = vector.load %arg2[%c0_7, %c0_8] : memref<32x8xf32, #tpu.memory_space<vmem>>, vector<32x8xf32>
    %cst_9 = arith.constant dense<0.000000e+00> : vector<8x32xf32>
    %14 = tpu.matmul %12, %13, %cst_9 {dimension_numbers = #tpu.dot_dimension_numbers<[1], [1], [0], [0], [0, 0, 1, 0], [], []>} : vector<8x8xf32>, vector<32x8xf32>, vector<8x32xf32> -> vector<8x32xf32>
    %15 = vector.extract_strided_slice %0 {offsets = [0, 0], sizes = [1, 32], strides = [1, 1]} : vector<9x32xf32> to vector<1x32xf32>
    %16 = vector.broadcast %15 : vector<1x32xf32> to vector<8x32xf32>
    %17 = arith.addf %14, %16 : vector<8x32xf32>
    %18 = arith.mulf %17, %17 : vector<8x32xf32>
    %cst_10 = arith.constant dense<0.000000e+00> : vector<8xf32>
    %19 = vector.multi_reduction <add>, %18, %cst_10 [1] : vector<8x32xf32> to vector<8xf32>
    %20 = vector.shape_cast %19 : vector<8xf32> to vector<8x1xf32>
    %cst_11 = arith.constant 3.200000e+01 : f32
    %21 = vector.broadcast %cst_11 : f32 to vector<8x1xf32>
    %22 = arith.divf %20, %21 : vector<8x1xf32>
    %cst_12 = arith.constant 9.99999993E-9 : f32
    %23 = vector.broadcast %cst_12 : f32 to vector<8x1xf32>
    %24 = arith.addf %22, %23 : vector<8x1xf32>
    %25 = math.rsqrt %24 : vector<8x1xf32>
    %26 = vector.broadcast %25 : vector<8x1xf32> to vector<8x32xf32>
    %27 = arith.mulf %17, %26 : vector<8x32xf32>
    %28 = tpu.concatenate %11, %27 in 1 : vector<8x32xf32>, vector<8x32xf32> -> vector<8x64xf32>
    %c0_13 = arith.constant 0 : index
    %c0_14 = arith.constant 0 : index
    %29 = vector.load %arg3[%c0_13, %c0_14] : memref<32x64xf32, #tpu.memory_space<vmem>>, vector<32x64xf32>
    %cst_15 = arith.constant dense<0.000000e+00> : vector<8x32xf32>
    %30 = tpu.matmul %28, %29, %cst_15 {dimension_numbers = #tpu.dot_dimension_numbers<[1], [1], [0], [0], [0, 0, 1, 0], [], []>} : vector<8x64xf32>, vector<32x64xf32>, vector<8x32xf32> -> vector<8x32xf32>
    %31 = vector.extract_strided_slice %0 {offsets = [1, 0], sizes = [1, 32], strides = [1, 1]} : vector<9x32xf32> to vector<1x32xf32>
    %32 = vector.broadcast %31 : vector<1x32xf32> to vector<8x32xf32>
    %33 = arith.addf %30, %32 : vector<8x32xf32>
    %cst_16 = arith.constant 2.000000e-01 : f32
    %34 = vector.broadcast %cst_16 : f32 to vector<8x32xf32>
    %35 = arith.mulf %34, %33 : vector<8x32xf32>
    %36 = arith.maximumf %33, %35 : vector<8x32xf32>
    %c0_17 = arith.constant 0 : index
    %c0_18 = arith.constant 0 : index
    %c0_19 = arith.constant 0 : index
    %37 = vector.load %arg4[%c0_17, %c0_18, %c0_19] : memref<7x32x32xf32, #tpu.memory_space<vmem>>, vector<1x32x32xf32>
    %38 = vector.shape_cast %37 : vector<1x32x32xf32> to vector<32x32xf32>
    %cst_20 = arith.constant dense<0.000000e+00> : vector<8x32xf32>
    %39 = tpu.matmul %36, %38, %cst_20 {dimension_numbers = #tpu.dot_dimension_numbers<[1], [1], [0], [0], [0, 0, 1, 0], [], []>} : vector<8x32xf32>, vector<32x32xf32>, vector<8x32xf32> -> vector<8x32xf32>
    %40 = vector.extract_strided_slice %0 {offsets = [2, 0], sizes = [1, 32], strides = [1, 1]} : vector<9x32xf32> to vector<1x32xf32>
    %41 = vector.broadcast %40 : vector<1x32xf32> to vector<8x32xf32>
    %42 = arith.addf %39, %41 : vector<8x32xf32>
    %cst_21 = arith.constant 2.000000e-01 : f32
    %43 = vector.broadcast %cst_21 : f32 to vector<8x32xf32>
    %44 = arith.mulf %43, %42 : vector<8x32xf32>
    %45 = arith.maximumf %42, %44 : vector<8x32xf32>
    %c1 = arith.constant 1 : index
    %c0_22 = arith.constant 0 : index
    %c0_23 = arith.constant 0 : index
    %46 = vector.load %arg4[%c1, %c0_22, %c0_23] : memref<7x32x32xf32, #tpu.memory_space<vmem>>, vector<1x32x32xf32>
    %47 = vector.shape_cast %46 : vector<1x32x32xf32> to vector<32x32xf32>
    %cst_24 = arith.constant dense<0.000000e+00> : vector<8x32xf32>
    %48 = tpu.matmul %45, %47, %cst_24 {dimension_numbers = #tpu.dot_dimension_numbers<[1], [1], [0], [0], [0, 0, 1, 0], [], []>} : vector<8x32xf32>, vector<32x32xf32>, vector<8x32xf32> -> vector<8x32xf32>
    %49 = vector.extract_strided_slice %0 {offsets = [3, 0], sizes = [1, 32], strides = [1, 1]} : vector<9x32xf32> to vector<1x32xf32>
    %50 = vector.broadcast %49 : vector<1x32xf32> to vector<8x32xf32>
    %51 = arith.addf %48, %50 : vector<8x32xf32>
    %cst_25 = arith.constant 2.000000e-01 : f32
    %52 = vector.broadcast %cst_25 : f32 to vector<8x32xf32>
    %53 = arith.mulf %52, %51 : vector<8x32xf32>
    %54 = arith.maximumf %51, %53 : vector<8x32xf32>
    %c2 = arith.constant 2 : index
    %c0_26 = arith.constant 0 : index
    %c0_27 = arith.constant 0 : index
    %55 = vector.load %arg4[%c2, %c0_26, %c0_27] : memref<7x32x32xf32, #tpu.memory_space<vmem>>, vector<1x32x32xf32>
    %56 = vector.shape_cast %55 : vector<1x32x32xf32> to vector<32x32xf32>
    %cst_28 = arith.constant dense<0.000000e+00> : vector<8x32xf32>
    %57 = tpu.matmul %54, %56, %cst_28 {dimension_numbers = #tpu.dot_dimension_numbers<[1], [1], [0], [0], [0, 0, 1, 0], [], []>} : vector<8x32xf32>, vector<32x32xf32>, vector<8x32xf32> -> vector<8x32xf32>
    %58 = vector.extract_strided_slice %0 {offsets = [4, 0], sizes = [1, 32], strides = [1, 1]} : vector<9x32xf32> to vector<1x32xf32>
    %59 = vector.broadcast %58 : vector<1x32xf32> to vector<8x32xf32>
    %60 = arith.addf %57, %59 : vector<8x32xf32>
    %cst_29 = arith.constant 2.000000e-01 : f32
    %61 = vector.broadcast %cst_29 : f32 to vector<8x32xf32>
    %62 = arith.mulf %61, %60 : vector<8x32xf32>
    %63 = arith.maximumf %60, %62 : vector<8x32xf32>
    %c3 = arith.constant 3 : index
    %c0_30 = arith.constant 0 : index
    %c0_31 = arith.constant 0 : index
    %64 = vector.load %arg4[%c3, %c0_30, %c0_31] : memref<7x32x32xf32, #tpu.memory_space<vmem>>, vector<1x32x32xf32>
    %65 = vector.shape_cast %64 : vector<1x32x32xf32> to vector<32x32xf32>
    %cst_32 = arith.constant dense<0.000000e+00> : vector<8x32xf32>
    %66 = tpu.matmul %63, %65, %cst_32 {dimension_numbers = #tpu.dot_dimension_numbers<[1], [1], [0], [0], [0, 0, 1, 0], [], []>} : vector<8x32xf32>, vector<32x32xf32>, vector<8x32xf32> -> vector<8x32xf32>
    %67 = vector.extract_strided_slice %0 {offsets = [5, 0], sizes = [1, 32], strides = [1, 1]} : vector<9x32xf32> to vector<1x32xf32>
    %68 = vector.broadcast %67 : vector<1x32xf32> to vector<8x32xf32>
    %69 = arith.addf %66, %68 : vector<8x32xf32>
    %cst_33 = arith.constant 2.000000e-01 : f32
    %70 = vector.broadcast %cst_33 : f32 to vector<8x32xf32>
    %71 = arith.mulf %70, %69 : vector<8x32xf32>
    %72 = arith.maximumf %69, %71 : vector<8x32xf32>
    %c4 = arith.constant 4 : index
    %c0_34 = arith.constant 0 : index
    %c0_35 = arith.constant 0 : index
    %73 = vector.load %arg4[%c4, %c0_34, %c0_35] : memref<7x32x32xf32, #tpu.memory_space<vmem>>, vector<1x32x32xf32>
    %74 = vector.shape_cast %73 : vector<1x32x32xf32> to vector<32x32xf32>
    %cst_36 = arith.constant dense<0.000000e+00> : vector<8x32xf32>
    %75 = tpu.matmul %72, %74, %cst_36 {dimension_numbers = #tpu.dot_dimension_numbers<[1], [1], [0], [0], [0, 0, 1, 0], [], []>} : vector<8x32xf32>, vector<32x32xf32>, vector<8x32xf32> -> vector<8x32xf32>
    %76 = vector.extract_strided_slice %0 {offsets = [6, 0], sizes = [1, 32], strides = [1, 1]} : vector<9x32xf32> to vector<1x32xf32>
    %77 = vector.broadcast %76 : vector<1x32xf32> to vector<8x32xf32>
    %78 = arith.addf %75, %77 : vector<8x32xf32>
    %cst_37 = arith.constant 2.000000e-01 : f32
    %79 = vector.broadcast %cst_37 : f32 to vector<8x32xf32>
    %80 = arith.mulf %79, %78 : vector<8x32xf32>
    %81 = arith.maximumf %78, %80 : vector<8x32xf32>
    %c5 = arith.constant 5 : index
    %c0_38 = arith.constant 0 : index
    %c0_39 = arith.constant 0 : index
    %82 = vector.load %arg4[%c5, %c0_38, %c0_39] : memref<7x32x32xf32, #tpu.memory_space<vmem>>, vector<1x32x32xf32>
    %83 = vector.shape_cast %82 : vector<1x32x32xf32> to vector<32x32xf32>
    %cst_40 = arith.constant dense<0.000000e+00> : vector<8x32xf32>
    %84 = tpu.matmul %81, %83, %cst_40 {dimension_numbers = #tpu.dot_dimension_numbers<[1], [1], [0], [0], [0, 0, 1, 0], [], []>} : vector<8x32xf32>, vector<32x32xf32>, vector<8x32xf32> -> vector<8x32xf32>
    %85 = vector.extract_strided_slice %0 {offsets = [7, 0], sizes = [1, 32], strides = [1, 1]} : vector<9x32xf32> to vector<1x32xf32>
    %86 = vector.broadcast %85 : vector<1x32xf32> to vector<8x32xf32>
    %87 = arith.addf %84, %86 : vector<8x32xf32>
    %cst_41 = arith.constant 2.000000e-01 : f32
    %88 = vector.broadcast %cst_41 : f32 to vector<8x32xf32>
    %89 = arith.mulf %88, %87 : vector<8x32xf32>
    %90 = arith.maximumf %87, %89 : vector<8x32xf32>
    %c6 = arith.constant 6 : index
    %c0_42 = arith.constant 0 : index
    %c0_43 = arith.constant 0 : index
    %91 = vector.load %arg4[%c6, %c0_42, %c0_43] : memref<7x32x32xf32, #tpu.memory_space<vmem>>, vector<1x32x32xf32>
    %92 = vector.shape_cast %91 : vector<1x32x32xf32> to vector<32x32xf32>
    %cst_44 = arith.constant dense<0.000000e+00> : vector<8x32xf32>
    %93 = tpu.matmul %90, %92, %cst_44 {dimension_numbers = #tpu.dot_dimension_numbers<[1], [1], [0], [0], [0, 0, 1, 0], [], []>} : vector<8x32xf32>, vector<32x32xf32>, vector<8x32xf32> -> vector<8x32xf32>
    %94 = vector.extract_strided_slice %0 {offsets = [8, 0], sizes = [1, 32], strides = [1, 1]} : vector<9x32xf32> to vector<1x32xf32>
    %95 = vector.broadcast %94 : vector<1x32xf32> to vector<8x32xf32>
    %96 = arith.addf %93, %95 : vector<8x32xf32>
    %cst_45 = arith.constant 2.000000e-01 : f32
    %97 = vector.broadcast %cst_45 : f32 to vector<8x32xf32>
    %98 = arith.mulf %97, %96 : vector<8x32xf32>
    %99 = arith.maximumf %96, %98 : vector<8x32xf32>
    %cst_46 = arith.constant 1.41421354 : f32
    %100 = vector.broadcast %cst_46 : f32 to vector<8x32xf32>
    %101 = arith.mulf %99, %100 : vector<8x32xf32>
    %102 = tpu.concatenate %101, %101, %101, %101 in 1 : vector<8x32xf32>, vector<8x32xf32>, vector<8x32xf32>, vector<8x32xf32> -> vector<8x128xf32>
    %c0_47 = arith.constant 0 : index
    %c0_48 = arith.constant 0 : index
    %103 = vector.load %arg6[%c0_47, %c0_48] : memref<8x128xf32, #tpu.memory_space<vmem>>, vector<8x128xf32>
    tpu.vector_store %arg6[%c0_47, %c0_48], %102 {strides = array<i32>} : memref<8x128xf32, #tpu.memory_space<vmem>>, vector<8x128xf32>,
    return
  }
}

</mosaic_0001>

<llo_original>
// kernel: tpu_custom_call.1
$region0: #{tpu_custom_call.1}
  #allocation0 [shape = 'u32[]', space=smem, size = 0x4, offset = 0x4, fixed_abs, tag = 'smem constant byte address 0x4 - core index']
  #allocation1 [shape = 'u32[72,128]{1,0:T(1,128)}', space=vmem, size = 0x9000, scoped, tag = 'internal scratch']
  %s0 = inlined_call_operand.vmem [shape: f32[8,32], index: 0, kind: input, shape index: {}]
  %s1 = inlined_call_operand.hbm [shape: f32[8,8], index: 1, kind: input, shape index: {}]
  %s2 = inlined_call_operand.vmem [shape: f32[32,8], index: 2, kind: input, shape index: {}]
  %s3 = inlined_call_operand.vmem [shape: f32[32,64], index: 3, kind: input, shape index: {}]
  %s4 = inlined_call_operand.hbm [shape: f32[7,32,32], index: 4, kind: input, shape index: {}]
  %s5 = inlined_call_operand.hbm [shape: f32[9,32], index: 5, kind: input, shape index: {}]
  %s6 = inlined_call_operand.hbm [shape: f32[8,128], index: 6, kind: output, shape index: {}]
  %s7 = sld [smem:[#allocation0]]
  $region46: #{tpu_custom_call.1} parent=0
    _
  %s9 = ssub.s32 1, %s7
  %s10 = scalar_select 0, %s9, %s7
  $region1: #{tpu_custom_call.1} parent=0
    #allocation2 [shape = 'u8[4096]{0}', space=vmem, size = 0x1000, scoped, tag = 'input window, operand 1, single buffered']
    #allocation3 [shape = 's32[1]{0}', space=sflag, size = 0x4, scoped, tag = 'scoped memory for tpu_custom_call.1']
    #allocation4 [shape = 's32[1]{0}', space=sflag, size = 0x4, scoped, tag = 'scoped memory for tpu_custom_call.1']
    #allocation5 [shape = 'u8[114688]{0}', space=vmem, size = 0x1c000, scoped, tag = 'input window, operand 4, single buffered']
    #allocation6 [shape = 's32[1]{0}', space=sflag, size = 0x4, scoped, tag = 'scoped memory for tpu_custom_call.1']
    #allocation7 [shape = 'u8[8192]{0}', space=vmem, size = 0x2000, scoped, tag = 'input window, operand 5, single buffered']
    #allocation8 [shape = 'u8[4096]{0}', space=vmem, size = 0x1000, scoped, tag = 'output window, operand 0, single buffered']
    %11 = vsyncpa [#allocation3], 0
    %12 = vsyncpa [#allocation6], 0
    %13 = vsyncpa [#allocation4], 0
    // Predicated region
    $region2: #{tpu_custom_call.1} parent=1 // pred_check
      _
    $region3: #{tpu_custom_call.1} parent=1 // pred_check_branch
      %15 = sbr.rel (0) target = $region5
    $region4: #{tpu_custom_call.1} parent=1 // pred_region
      _
    $region5: #{tpu_custom_call.1} parent=1 // pred_fallthru
      _
    // Predicated region
    $region6: #{tpu_custom_call.1} parent=1 // pred_check
      _
    $region7: #{tpu_custom_call.1} parent=1 // pred_check_branch
      %17 = sbr.rel (0) target = $region9
    $region8: #{tpu_custom_call.1} parent=1 // pred_region
      %19 = vsyncadd [#allocation3], 0
      %s21 = sshll.u32 %s1, 4
      %s22 = int_to_ptr.hbm [resolvable:$true] %s21
      %s23 = sshll.u32 [#allocation2], 4
      %s24 = int_to_ptr.vmem [resolvable:$true] %s23
      %26 = dma.hbm_to_vmem [thread:$0]  %s22, 128, %s24, [#allocation3]
    $region9: #{tpu_custom_call.1} parent=1 // pred_fallthru
      _
    // Predicated region
    $region10: #{tpu_custom_call.1} parent=1 // pred_check
      _
    $region11: #{tpu_custom_call.1} parent=1 // pred_check_branch
      %28 = sbr.rel (0) target = $region13
    $region12: #{tpu_custom_call.1} parent=1 // pred_region
      _
    $region13: #{tpu_custom_call.1} parent=1 // pred_fallthru
      _
    // Predicated region
    $region14: #{tpu_custom_call.1} parent=1 // pred_check
      _
    $region15: #{tpu_custom_call.1} parent=1 // pred_check_branch
      %30 = sbr.rel (0) target = $region17
    $region16: #{tpu_custom_call.1} parent=1 // pred_region
      _
    $region17: #{tpu_custom_call.1} parent=1 // pred_fallthru
      _
    // Predicated region
    $region18: #{tpu_custom_call.1} parent=1 // pred_check
      _
    $region19: #{tpu_custom_call.1} parent=1 // pred_check_branch
      %32 = sbr.rel (0) target = $region21
    $region20: #{tpu_custom_call.1} parent=1 // pred_region
      %34 = vsyncadd [#allocation6], 0
      %s35 = sshll.u32 %s4, 4
      %s36 = int_to_ptr.hbm [resolvable:$true] %s35
      %s37 = sshll.u32 [#allocation5], 4
      %s38 = int_to_ptr.vmem [resolvable:$true] %s37
      %43 = dma.hbm_to_vmem [thread:$0]  %s36, 3584, %s38, [#allocation6], 128, 128, 8
    $region21: #{tpu_custom_call.1} parent=1 // pred_fallthru
      _
    // Predicated region
    $region22: #{tpu_custom_call.1} parent=1 // pred_check
      _
    $region23: #{tpu_custom_call.1} parent=1 // pred_check_branch
      %45 = sbr.rel (0) target = $region25
    $region24: #{tpu_custom_call.1} parent=1 // pred_region
      %47 = vsyncadd [#allocation6], 0
      %s48 = sshll.u32 %s5, 4
      %s49 = int_to_ptr.hbm [resolvable:$true] %s48
      %s50 = sshll.u32 [#allocation7], 4
      %s51 = int_to_ptr.vmem [resolvable:$true] %s50
      %56 = dma.hbm_to_vmem [thread:$0]  %s49, 256, %s51, [#allocation6], 128, 128, 8
    $region25: #{tpu_custom_call.1} parent=1 // pred_fallthru
      _
    // Predicated region
    $region26: #{tpu_custom_call.1} parent=1 // pred_check
      _
    $region27: #{tpu_custom_call.1} parent=1 // pred_check_branch
      %58 = sbr.rel (0) target = $region29
    $region28: #{tpu_custom_call.1} parent=1 // pred_region
      %60 = dma.done [#allocation3], 128
    $region29: #{tpu_custom_call.1} parent=1 // pred_fallthru
      _
    // Predicated region
    $region30: #{tpu_custom_call.1} parent=1 // pred_check
      _
    $region31: #{tpu_custom_call.1} parent=1 // pred_check_branch
      %62 = sbr.rel (0) target = $region33
    $region32: #{tpu_custom_call.1} parent=1 // pred_region
      %64 = dma.done [#allocation6], 3584
    $region33: #{tpu_custom_call.1} parent=1 // pred_fallthru
      _
    // Predicated region
    $region34: #{tpu_custom_call.1} parent=1 // pred_check
      _
    $region35: #{tpu_custom_call.1} parent=1 // pred_check_branch
      %66 = sbr.rel (0) target = $region37
    $region36: #{tpu_custom_call.1} parent=1 // pred_region
      %68 = dma.done [#allocation6], 256
    $region37: #{tpu_custom_call.1} parent=1 // pred_fallthru
      _
    %v69 = vld [vmem:[#allocation7] sm:$0xff]
    %v70 = vld [vmem:[#allocation7 + $0x8] sm:$0x1]
    %v71 = vld [vmem:[%s0] sm:$0xff]
    %v72 = vmul.f32 %v71, %v71
    %vm73 = vcmask 261120
    %v74 = vsel %vm73, %v72, 0.0
    %75 = vadd.xlane.f32.xlu0 %v74
    %v76 = vpop.xlane.xlu0 %75
    %v77 = vrcp.pop 32.0
    %v78 = vmul.f32 32.0, %v77
    %v79 = vsub.f32 1.0, %v78
    %v80 = vmul.f32 %v77, %v79
    %v81 = vadd.f32 %v77, %v80
    %vm82 = vweird.f32 %v77
    %v83 = vsel %vm82, %v77, %v81
    %v84 = vmul.f32 %v76, %v83
    %v85 = vadd.f32 %v84, 1e-08
    %v86 = vrsqrt.pop %v85
    %v87 = vmul.f32 %v86, %v85
    %v88 = vmul.f32 %v87, %v86
    %v89 = vmul.f32 0.5, %v88
    %v90 = vsub.f32 1.5, %v89
    %v91 = vmul.f32 %v86, %v90
    %vm92 = vweird.f32 %v85
    %vm93 = vweird.f32 %v86
    %vm94 = vmor %vm92, %vm93
    %v95 = vsel %vm94, %v86, %v91
    %v96 = vmul.f32 %v71, %v95
    %v97 = vld [vmem:[#allocation2] sm:$0xff]
    %v98 = vld [vmem:[%s2] sm:$0xff]
    %v99 = vld [vmem:[%s2 + $0x8] sm:$0xff]
    %v100 = vld [vmem:[%s2 + $0x10] sm:$0xff]
    %v101 = vld [vmem:[%s2 + $0x18] sm:$0xff]
    %v102 = vperm.slane %v69, 0
    %vm103 = vcmask 64512
    %v105 = vsel %vm103, %v97, 0
    %v108 = vsel %vm103, %v98, 0
    %v111 = vsel %vm103, %v99, 0
    %v114 = vsel %vm103, %v100, 0
    %v117 = vsel %vm103, %v101, 0
    %119 = vmatpush.xpose.msra.mxu0 0.0
    %120 = vmatpush.xpose.msra.mxu0 0.0
    %121 = vmatpush.xpose.msra.mxu0 0.0
    %122 = vmatpush.xpose.msra.mxu0 0.0
    %123 = vmatpush.xpose.msra.mxu0 0.0
    %124 = vmatpush.xpose.msra.mxu0 0.0
    %125 = vmatpush.xpose.msra.mxu0 0.0
    %126 = vmatpush.xpose.msra.mxu0 0.0
    %127 = vmatpush.xpose.msra.mxu0 0.0
    %128 = vmatpush.xpose.msra.mxu0 0.0
    %129 = vmatpush.xpose.msra.mxu0 0.0
    %130 = vmatpush.xpose.msra.mxu0 0.0
    %131 = vmatpush.xpose.msra.mxu0 %v117
    %132 = vmatpush.xpose.msra.mxu0 %v114
    %133 = vmatpush.xpose.msra.mxu0 %v111
    %134 = vmatpush.xpose.msra.mxu0 %v108
    %135 = vmatmul.f32.gmra.mxu0 %v105
    %v136 = vpop.f32.mrf.mxu0
    %v137 = vadd.f32 %v102, %v136
    %138 = vdwg.mxu0
    %v139 = vmul.f32 %v137, %v137
    %v140 = vsel %vm73, %v139, 0.0
    %141 = vadd.xlane.f32.xlu0 %v140
    %v142 = vpop.xlane.xlu0 %141
    %v143 = vmul.f32 %v142, %v83
    %v144 = vadd.f32 %v143, 1e-08
    %v145 = vrsqrt.pop %v144
    %v146 = vmul.f32 %v145, %v144
    %v147 = vmul.f32 %v146, %v145
    %v148 = vmul.f32 0.5, %v147
    %v149 = vsub.f32 1.5, %v148
    %v150 = vmul.f32 %v145, %v149
    %vm151 = vweird.f32 %v144
    %vm152 = vweird.f32 %v145
    %vm153 = vmor %vm151, %vm152
    %v154 = vsel %vm153, %v145, %v150
    %v155 = vmul.f32 %v137, %v154
    %157 = vrot.lane.b32.xlu0 %v155, 32
    %v158 = vpop.permute.xlu0 %157
    %v160 = vsel %vm73, %v96, %v158
    %v161 = vld [vmem:[%s3] sm:$0xff]
    %v162 = vld [vmem:[%s3 + $0x8] sm:$0xff]
    %v163 = vld [vmem:[%s3 + $0x10] sm:$0xff]
    %v164 = vld [vmem:[%s3 + $0x18] sm:$0xff]
    %v165 = vperm.slane %v69, 1
    %vm166 = vcmask 523264
    %v168 = vsel %vm166, %v160, 0
    %v171 = vsel %vm166, %v161, 0
    %v174 = vsel %vm166, %v162, 0
    %v177 = vsel %vm166, %v163, 0
    %v180 = vsel %vm166, %v164, 0
    %182 = vmatpush.xpose.msra.mxu0 0.0
    %183 = vmatpush.xpose.msra.mxu0 0.0
    %184 = vmatpush.xpose.msra.mxu0 0.0
    %185 = vmatpush.xpose.msra.mxu0 0.0
    %186 = vmatpush.xpose.msra.mxu0 0.0
    %187 = vmatpush.xpose.msra.mxu0 0.0
    %188 = vmatpush.xpose.msra.mxu0 0.0
    %189 = vmatpush.xpose.msra.mxu0 0.0
    %190 = vmatpush.xpose.msra.mxu0 0.0
    %191 = vmatpush.xpose.msra.mxu0 0.0
    %192 = vmatpush.xpose.msra.mxu0 0.0
    %193 = vmatpush.xpose.msra.mxu0 0.0
    %194 = vmatpush.xpose.msra.mxu0 %v180
    %195 = vmatpush.xpose.msra.mxu0 %v177
    %196 = vmatpush.xpose.msra.mxu0 %v174
    %197 = vmatpush.xpose.msra.mxu0 %v171
    %198 = vmatmul.f32.gmra.mxu0 %v168
    %v199 = vpop.f32.mrf.mxu0
    %v200 = vadd.f32 %v165, %v199
    %201 = vdwg.mxu0
    %v202 = vmul.f32 %v200, 0.2
    %v203 = vmax.f32 %v200, %v202
    %v204 = vld [vmem:[#allocation5] sm:$0xff]
    %v205 = vld [vmem:[#allocation5 + $0x8] sm:$0xff]
    %v206 = vld [vmem:[#allocation5 + $0x10] sm:$0xff]
    %v207 = vld [vmem:[#allocation5 + $0x18] sm:$0xff]
    %v208 = vperm.slane %v69, 2
    %v210 = vsel %vm73, %v203, 0
    %v213 = vsel %vm73, %v204, 0
    %v216 = vsel %vm73, %v205, 0
    %v219 = vsel %vm73, %v206, 0
    %v222 = vsel %vm73, %v207, 0
    %224 = vmatpush.xpose.msra.mxu0 0.0
    %225 = vmatpush.xpose.msra.mxu0 0.0
    %226 = vmatpush.xpose.msra.mxu0 0.0
    %227 = vmatpush.xpose.msra.mxu0 0.0
    %228 = vmatpush.xpose.msra.mxu0 0.0
    %229 = vmatpush.xpose.msra.mxu0 0.0
    %230 = vmatpush.xpose.msra.mxu0 0.0
    %231 = vmatpush.xpose.msra.mxu0 0.0
    %232 = vmatpush.xpose.msra.mxu0 0.0
    %233 = vmatpush.xpose.msra.mxu0 0.0
    %234 = vmatpush.xpose.msra.mxu0 0.0
    %235 = vmatpush.xpose.msra.mxu0 0.0
    %236 = vmatpush.xpose.msra.mxu0 %v222
    %237 = vmatpush.xpose.msra.mxu0 %v219
    %238 = vmatpush.xpose.msra.mxu0 %v216
    %239 = vmatpush.xpose.msra.mxu0 %v213
    %240 = vmatmul.f32.gmra.mxu0 %v210
    %v241 = vpop.f32.mrf.mxu0
    %v242 = vadd.f32 %v208, %v241
    %243 = vdwg.mxu0
    %v244 = vmul.f32 %v242, 0.2
    %v245 = vmax.f32 %v242, %v244
    %s246 = scalar_lea.vmem [#allocation5], 32
    %v247 = vld [vmem:[%s246] sm:$0xff]
    %v248 = vld [vmem:[%s246 + $0x8] sm:$0xff]
    %v249 = vld [vmem:[%s246 + $0x10] sm:$0xff]
    %v250 = vld [vmem:[%s246 + $0x18] sm:$0xff]
    %v251 = vperm.slane %v69, 3
    %v253 = vsel %vm73, %v245, 0
    %v256 = vsel %vm73, %v247, 0
    %v259 = vsel %vm73, %v248, 0
    %v262 = vsel %vm73, %v249, 0
    %v265 = vsel %vm73, %v250, 0
    %267 = vmatpush.xpose.msra.mxu0 0.0
    %268 = vmatpush.xpose.msra.mxu0 0.0
    %269 = vmatpush.xpose.msra.mxu0 0.0
    %270 = vmatpush.xpose.msra.mxu0 0.0
    %271 = vmatpush.xpose.msra.mxu0 0.0
    %272 = vmatpush.xpose.msra.mxu0 0.0
    %273 = vmatpush.xpose.msra.mxu0 0.0
    %274 = vmatpush.xpose.msra.mxu0 0.0
    %275 = vmatpush.xpose.msra.mxu0 0.0
    %276 = vmatpush.xpose.msra.mxu0 0.0
    %277 = vmatpush.xpose.msra.mxu0 0.0
    %278 = vmatpush.xpose.msra.mxu0 0.0
    %279 = vmatpush.xpose.msra.mxu0 %v265
    %280 = vmatpush.xpose.msra.mxu0 %v262
    %281 = vmatpush.xpose.msra.mxu0 %v259
    %282 = vmatpush.xpose.msra.mxu0 %v256
    %283 = vmatmul.f32.gmra.mxu0 %v253
    %v284 = vpop.f32.mrf.mxu0
    %v285 = vadd.f32 %v251, %v284
    %286 = vdwg.mxu0
    %v287 = vmul.f32 %v285, 0.2
    %v288 = vmax.f32 %v285, %v287
    %s289 = scalar_lea.vmem [#allocation5], 64
    %v290 = vld [vmem:[%s289] sm:$0xff]
    %v291 = vld [vmem:[%s289 + $0x8] sm:$0xff]
    %v292 = vld [vmem:[%s289 + $0x10] sm:$0xff]
    %v293 = vld [vmem:[%s289 + $0x18] sm:$0xff]
    %v294 = vperm.slane %v69, 4
    %v296 = vsel %vm73, %v288, 0
    %v299 = vsel %vm73, %v290, 0
    %v302 = vsel %vm73, %v291, 0
    %v305 = vsel %vm73, %v292, 0
    %v308 = vsel %vm73, %v293, 0
    %310 = vmatpush.xpose.msra.mxu0 0.0
    %311 = vmatpush.xpose.msra.mxu0 0.0
    %312 = vmatpush.xpose.msra.mxu0 0.0
    %313 = vmatpush.xpose.msra.mxu0 0.0
    %314 = vmatpush.xpose.msra.mxu0 0.0
    %315 = vmatpush.xpose.msra.mxu0 0.0
    %316 = vmatpush.xpose.msra.mxu0 0.0
    %317 = vmatpush.xpose.msra.mxu0 0.0
    %318 = vmatpush.xpose.msra.mxu0 0.0
    %319 = vmatpush.xpose.msra.mxu0 0.0
    %320 = vmatpush.xpose.msra.mxu0 0.0
    %321 = vmatpush.xpose.msra.mxu0 0.0
    %322 = vmatpush.xpose.msra.mxu0 %v308
    %323 = vmatpush.xpose.msra.mxu0 %v305
    %324 = vmatpush.xpose.msra.mxu0 %v302
    %325 = vmatpush.xpose.msra.mxu0 %v299
    %326 = vmatmul.f32.gmra.mxu0 %v296
    %v327 = vpop.f32.mrf.mxu0
    %v328 = vadd.f32 %v294, %v327
    %329 = vdwg.mxu0
    %v330 = vmul.f32 %v328, 0.2
    %v331 = vmax.f32 %v328, %v330
    %s332 = scalar_lea.vmem [#allocation5], 96
    %v333 = vld [vmem:[%s332] sm:$0xff]
    %v334 = vld [vmem:[%s332 + $0x8] sm:$0xff]
    %v335 = vld [vmem:[%s332 + $0x10] sm:$0xff]
    %v336 = vld [vmem:[%s332 + $0x18] sm:$0xff]
    %v337 = vperm.slane %v69, 5
    %v339 = vsel %vm73, %v331, 0
    %v342 = vsel %vm73, %v333, 0
    %v345 = vsel %vm73, %v334, 0
    %v348 = vsel %vm73, %v335, 0
    %v351 = vsel %vm73, %v336, 0
    %353 = vmatpush.xpose.msra.mxu0 0.0
    %354 = vmatpush.xpose.msra.mxu0 0.0
    %355 = vmatpush.xpose.msra.mxu0 0.0
    %356 = vmatpush.xpose.msra.mxu0 0.0
    %357 = vmatpush.xpose.msra.mxu0 0.0
    %358 = vmatpush.xpose.msra.mxu0 0.0
    %359 = vmatpush.xpose.msra.mxu0 0.0
    %360 = vmatpush.xpose.msra.mxu0 0.0
    %361 = vmatpush.xpose.msra.mxu0 0.0
    %362 = vmatpush.xpose.msra.mxu0 0.0
    %363 = vmatpush.xpose.msra.mxu0 0.0
    %364 = vmatpush.xpose.msra.mxu0 0.0
    %365 = vmatpush.xpose.msra.mxu0 %v351
    %366 = vmatpush.xpose.msra.mxu0 %v348
    %367 = vmatpush.xpose.msra.mxu0 %v345
    %368 = vmatpush.xpose.msra.mxu0 %v342
    %369 = vmatmul.f32.gmra.mxu0 %v339
    %v370 = vpop.f32.mrf.mxu0
    %v371 = vadd.f32 %v337, %v370
    %372 = vdwg.mxu0
    %v373 = vmul.f32 %v371, 0.2
    %v374 = vmax.f32 %v371, %v373
    %s375 = scalar_lea.vmem [#allocation5], 128
    %v376 = vld [vmem:[%s375] sm:$0xff]
    %v377 = vld [vmem:[%s375 + $0x8] sm:$0xff]
    %v378 = vld [vmem:[%s375 + $0x10] sm:$0xff]
    %v379 = vld [vmem:[%s375 + $0x18] sm:$0xff]
    %v380 = vperm.slane %v69, 6
    %v382 = vsel %vm73, %v374, 0
    %v385 = vsel %vm73, %v376, 0
    %v388 = vsel %vm73, %v377, 0
    %v391 = vsel %vm73, %v378, 0
    %v394 = vsel %vm73, %v379, 0
    %396 = vmatpush.xpose.msra.mxu0 0.0
    %397 = vmatpush.xpose.msra.mxu0 0.0
    %398 = vmatpush.xpose.msra.mxu0 0.0
    %399 = vmatpush.xpose.msra.mxu0 0.0
    %400 = vmatpush.xpose.msra.mxu0 0.0
    %401 = vmatpush.xpose.msra.mxu0 0.0
    %402 = vmatpush.xpose.msra.mxu0 0.0
    %403 = vmatpush.xpose.msra.mxu0 0.0
    %404 = vmatpush.xpose.msra.mxu0 0.0
    %405 = vmatpush.xpose.msra.mxu0 0.0
    %406 = vmatpush.xpose.msra.mxu0 0.0
    %407 = vmatpush.xpose.msra.mxu0 0.0
    %408 = vmatpush.xpose.msra.mxu0 %v394
    %409 = vmatpush.xpose.msra.mxu0 %v391
    %410 = vmatpush.xpose.msra.mxu0 %v388
    %411 = vmatpush.xpose.msra.mxu0 %v385
    %412 = vmatmul.f32.gmra.mxu0 %v382
    %v413 = vpop.f32.mrf.mxu0
    %v414 = vadd.f32 %v380, %v413
    %415 = vdwg.mxu0
    %v416 = vmul.f32 %v414, 0.2
    %v417 = vmax.f32 %v414, %v416
    %s418 = scalar_lea.vmem [#allocation5], 160
    %v419 = vld [vmem:[%s418] sm:$0xff]
    %v420 = vld [vmem:[%s418 + $0x8] sm:$0xff]
    %v421 = vld [vmem:[%s418 + $0x10] sm:$0xff]
    %v422 = vld [vmem:[%s418 + $0x18] sm:$0xff]
    %v423 = vperm.slane %v69, 7
    %v425 = vsel %vm73, %v417, 0
    %v428 = vsel %vm73, %v419, 0
    %v431 = vsel %vm73, %v420, 0
    %v434 = vsel %vm73, %v421, 0
    %v437 = vsel %vm73, %v422, 0
    %439 = vmatpush.xpose.msra.mxu0 0.0
    %440 = vmatpush.xpose.msra.mxu0 0.0
    %441 = vmatpush.xpose.msra.mxu0 0.0
    %442 = vmatpush.xpose.msra.mxu0 0.0
    %443 = vmatpush.xpose.msra.mxu0 0.0
    %444 = vmatpush.xpose.msra.mxu0 0.0
    %445 = vmatpush.xpose.msra.mxu0 0.0
    %446 = vmatpush.xpose.msra.mxu0 0.0
    %447 = vmatpush.xpose.msra.mxu0 0.0
    %448 = vmatpush.xpose.msra.mxu0 0.0
    %449 = vmatpush.xpose.msra.mxu0 0.0
    %450 = vmatpush.xpose.msra.mxu0 0.0
    %451 = vmatpush.xpose.msra.mxu0 %v437
    %452 = vmatpush.xpose.msra.mxu0 %v434
    %453 = vmatpush.xpose.msra.mxu0 %v431
    %454 = vmatpush.xpose.msra.mxu0 %v428
    %455 = vmatmul.f32.gmra.mxu0 %v425
    %v456 = vpop.f32.mrf.mxu0
    %v457 = vadd.f32 %v423, %v456
    %458 = vdwg.mxu0
    %v459 = vmul.f32 %v457, 0.2
    %v460 = vmax.f32 %v457, %v459
    %s461 = scalar_lea.vmem [#allocation5], 192
    %v462 = vld [vmem:[%s461] sm:$0xff]
    %v463 = vld [vmem:[%s461 + $0x8] sm:$0xff]
    %v464 = vld [vmem:[%s461 + $0x10] sm:$0xff]
    %v465 = vld [vmem:[%s461 + $0x18] sm:$0xff]
    %v466 = vperm.slane %v70, 0
    %v468 = vsel %vm73, %v460, 0
    %v471 = vsel %vm73, %v462, 0
    %v474 = vsel %vm73, %v463, 0
    %v477 = vsel %vm73, %v464, 0
    %v480 = vsel %vm73, %v465, 0
    %482 = vmatpush.xpose.msra.mxu0 0.0
    %483 = vmatpush.xpose.msra.mxu0 0.0
    %484 = vmatpush.xpose.msra.mxu0 0.0
    %485 = vmatpush.xpose.msra.mxu0 0.0
    %486 = vmatpush.xpose.msra.mxu0 0.0
    %487 = vmatpush.xpose.msra.mxu0 0.0
    %488 = vmatpush.xpose.msra.mxu0 0.0
    %489 = vmatpush.xpose.msra.mxu0 0.0
    %490 = vmatpush.xpose.msra.mxu0 0.0
    %491 = vmatpush.xpose.msra.mxu0 0.0
    %492 = vmatpush.xpose.msra.mxu0 0.0
    %493 = vmatpush.xpose.msra.mxu0 0.0
    %494 = vmatpush.xpose.msra.mxu0 %v480
    %495 = vmatpush.xpose.msra.mxu0 %v477
    %496 = vmatpush.xpose.msra.mxu0 %v474
    %497 = vmatpush.xpose.msra.mxu0 %v471
    %498 = vmatmul.f32.gmra.mxu0 %v468
    %v499 = vpop.f32.mrf.mxu0
    %v500 = vadd.f32 %v466, %v499
    %501 = vdwg.mxu0
    %v502 = vmul.f32 %v500, 0.2
    %v503 = vmax.f32 %v500, %v502
    %v504 = vmul.f32 %v503, 1.4142135
    %506 = vrot.lane.b32.xlu0 %v504, 32
    %v507 = vpop.permute.xlu0 %506
    %509 = vrot.lane.b32.xlu0 %v504, 64
    %v510 = vpop.permute.xlu0 %509
    %512 = vrot.lane.b32.xlu0 %v504, 96
    %v513 = vpop.permute.xlu0 %512
    %v515 = vsel %vm73, %v504, %v507
    %v516 = vsel %vm166, %v515, %v510
    %vm517 = vcmask 785408
    %v518 = vsel %vm517, %v516, %v513
    %519 = vst [vmem:[#allocation8] sm:$0xff] %v518
    // Predicated region
    $region38: #{tpu_custom_call.1} parent=1 // pred_check
      _
    $region39: #{tpu_custom_call.1} parent=1 // pred_check_branch
      %521 = sbr.rel (0) target = $region41
    $region40: #{tpu_custom_call.1} parent=1 // pred_region
      %523 = vsyncadd [#allocation4], 0
      %s525 = sshll.u32 [#allocation8], 4
      %s526 = int_to_ptr.vmem [resolvable:$true] %s525
      %s527 = sshll.u32 %s6, 4
      %s528 = int_to_ptr.hbm [resolvable:$true] %s527
      %530 = dma.vmem_to_hbm [thread:$0]  %s526, 128, %s528, [#allocation4]
    $region41: #{tpu_custom_call.1} parent=1 // pred_fallthru
      _
    // Predicated region
    $region42: #{tpu_custom_call.1} parent=1 // pred_check
      _
    $region43: #{tpu_custom_call.1} parent=1 // pred_check_branch
      %532 = sbr.rel (0) target = $region45
    $region44: #{tpu_custom_call.1} parent=1 // pred_region
      %534 = dma.done [#allocation4], 128
    $region45: #{tpu_custom_call.1} parent=1 // pred_fallthru
      _
    %535 = vsyncpa [#allocation3], 1
    %536 = vsyncpa [#allocation6], 1
    %537 = vsyncpa [#allocation4], 1

</llo_original>
